<compile_context>
chip_gen: v7x
topology: tpu7x:2x2x1
jax: 0.10.0
libtpu: 0.0.40
codegen_flags: <defaults>
</compile_context>

<pallas_src>
import math

import jax
import jax.numpy as jnp
from jax.experimental import pallas as pl
from jax.experimental.pallas import tpu as pltpu

_EPS = 1e-5                        # nn.BatchNorm2d default eps
_LANES = 128                       # TPU vreg lane width
_VMEM_LIMIT = 64 * 1024 * 1024     # <= v7x physical VMEM, > v5e/v6e scoped defaults


def _round_up(x, k):
    return ((x + k - 1) // k) * k


# ----------------------------------------------------------------------------
# Kernels (grid = (N,); one image of H*W rows per grid step)
# ----------------------------------------------------------------------------
def _stat_accumulate(st_ref, acc):
    """Single-traversal per-channel sum / sum-of-squares, accumulated over the grid."""
    @pl.when(pl.program_id(0) == 0)
    def _():
        st_ref[...] = jnp.zeros_like(st_ref)
    st_ref[...] += jnp.concatenate(
        [jnp.sum(acc, axis=0, keepdims=True),
         jnp.sum(acc * acc, axis=0, keepdims=True)], axis=0)


def _conv1_kernel(x_ref, w_ref, y_ref, st_ref):
    # conv1 (1x1) as one MXU matmul; bf16 inputs, f32 accumulation.
    acc = jnp.dot(x_ref[0], w_ref[...], preferred_element_type=jnp.float32)
    y_ref[0] = acc.astype(jnp.bfloat16)
    _stat_accumulate(st_ref, acc)


def _make_conv2_kernel(h, w, ppad, buf_rows):
    hw = h * w
    halo = w + 1                    # largest |flat row shift| of a 3x3 tap

    def kernel(a_ref, ss_ref, w_ref, y_ref, st_ref, ybuf_ref):
        @pl.when(pl.program_id(0) == 0)
        def _():                    # zero the halo rows once; they are never overwritten
            ybuf_ref[0:halo, :] = jnp.zeros((halo, ppad), jnp.bfloat16)
            ybuf_ref[halo + hw:, :] = jnp.zeros((buf_rows - halo - hw, ppad), jnp.bfloat16)

        # bn1 (pre-folded scale/shift) + relu, stored ONCE in bf16 into the halo buffer.
        y1 = jnp.maximum(a_ref[0].astype(jnp.float32) * ss_ref[0:1, :] + ss_ref[1:2, :], 0.0)
        ybuf_ref[halo:halo + hw, :] = y1.astype(jnp.bfloat16)

        row = jax.lax.broadcasted_iota(jnp.int32, (hw, 1), 0)
        ii = row // w               # output pixel row
        jj = row % w                # output pixel col

        # conv2 (3x3, pad=1, stride=1): 9 shifted-row-window matmuls, f32 accumulation.
        acc = jnp.zeros((hw, ppad), jnp.float32)
        for t in range(9):          # static unroll over the taps
            di, dj = t // 3 - 1, t % 3 - 1
            k = di * w + dj
            tap = ybuf_ref[halo + k: halo + k + hw, :]          # shifted rows == shifted pixels
            valid = ((ii + di >= 0) & (ii + di < h) &
                     (jj + dj >= 0) & (jj + dj < w))
            tap = jnp.where(valid, tap, 0).astype(jnp.bfloat16)  # zero padding / edge mask
            acc = acc + jnp.dot(tap, w_ref[t], preferred_element_type=jnp.float32)

        y_ref[0] = acc.astype(jnp.bfloat16)
        _stat_accumulate(st_ref, acc)

    return kernel


def _conv3_kernel(a_ref, ss_ref, w_ref, y_ref, st_ref):
    # bn2 (pre-folded) + relu fused into conv3 (1x1).
    y2 = jnp.maximum(a_ref[0].astype(jnp.float32) * ss_ref[0:1, :] + ss_ref[1:2, :], 0.0)
    acc = jnp.dot(y2.astype(jnp.bfloat16), w_ref[...], preferred_element_type=jnp.float32)
    y_ref[0] = acc.astype(jnp.bfloat16)
    _stat_accumulate(st_ref, acc)


def _finalize_kernel(a_ref, ss_ref, x_ref, o_ref):
    # bn3 (pre-folded) + residual add + relu.
    out = (a_ref[0].astype(jnp.float32) * ss_ref[0:1, :] + ss_ref[1:2, :]
           + x_ref[0].astype(jnp.float32))
    o_ref[0] = jnp.maximum(out, 0.0).astype(o_ref.dtype)


# ----------------------------------------------------------------------------
# Wrapper: layout, weight packing, BN scale/shift folds, four pallas_calls
# ----------------------------------------------------------------------------
def _img_spec(rows, cols):
    return pl.BlockSpec((1, rows, cols), lambda b: (b, 0, 0))


def _bcast_spec(shape):
    nd = len(shape)
    return pl.BlockSpec(tuple(shape), lambda b, _nd=nd: (0,) * _nd)


def _scale_shift(stats, gamma, beta, count, cdim):
    """Fold training-mode BN (biased variance, eps=1e-5) into (scale, shift) rows."""
    mean = stats[0] / count
    var = jnp.maximum(stats[1] / count - mean * mean, 0.0)
    g = jnp.pad(gamma.astype(jnp.float32), (0, cdim - gamma.shape[0]))
    b = jnp.pad(beta.astype(jnp.float32), (0, cdim - beta.shape[0]))
    scale = g * jax.lax.rsqrt(var + _EPS)
    shift = b - mean * scale
    return jnp.stack([scale, shift], axis=0)          # (2, cdim) f32


def bottleneck_forward(x_nchw, params):
    n, cin, h, w = x_nchw.shape
    planes = params["planes"]
    cout = 4 * planes
    # TODO(synk): stride>1 / downsample and the QA branch are unimplemented; fail loudly.
    assert cin == cout, "stride=1, downsample=None requires inplanes == 4 * planes"
    hw = h * w
    m = n * hw
    ppad = _round_up(planes, _LANES)                  # lane-dense intermediate channels
    buf_rows = _round_up(hw + 2 * (w + 1), 8)         # y1 halo buffer rows

    # NCHW f32 -> unpadded (N, H*W, Cin) bf16 rows: halves the dominant HBM read.
    x3d = jnp.transpose(x_nchw, (0, 2, 3, 1)).reshape(n, hw, cin).astype(jnp.bfloat16)

    # Conv weights -> matmul layout, bf16, intermediate channel dims padded to 128 lanes.
    w1 = jnp.pad(params["conv1_w"][:, :, 0, 0].T,
                 ((0, 0), (0, ppad - planes))).astype(jnp.bfloat16)          # (cin, ppad)
    w2 = jnp.transpose(params["conv2_w"], (2, 3, 1, 0)).reshape(9, planes, planes)
    w2 = jnp.pad(w2, ((0, 0), (0, ppad - planes),
                      (0, ppad - planes))).astype(jnp.bfloat16)              # (9, ppad, ppad)
    w3 = jnp.pad(params["conv3_w"][:, :, 0, 0].T,
                 ((0, ppad - planes), (0, 0))).astype(jnp.bfloat16)          # (ppad, cout)

    cp_red = pltpu.CompilerParams(dimension_semantics=("arbitrary",),
                                  vmem_limit_bytes=_VMEM_LIMIT)
    cp_par = pltpu.CompilerParams(dimension_semantics=("parallel",),
                                  vmem_limit_bytes=_VMEM_LIMIT)

    # ---- pass 1: conv1 (1x1) + batch statistics ------------------------------------
    acc1, st1 = pl.pallas_call(
        _conv1_kernel,
        grid=(n,),
        in_specs=[_img_spec(hw, cin), _bcast_spec(w1.shape)],
        out_specs=(_img_spec(hw, ppad), _bcast_spec((2, ppad))),
        out_shape=(jax.ShapeDtypeStruct((n, hw, ppad), jnp.bfloat16),
                   jax.ShapeDtypeStruct((2, ppad), jnp.float32)),
        compiler_params=cp_red,
        cost_estimate=pl.CostEstimate(
            flops=2 * m * cin * ppad, transcendentals=0,
            bytes_accessed=2 * (m * cin + cin * ppad + m * ppad)),
    )(x3d, w1)
    ss1 = _scale_shift(st1, params["bn1_g"], params["bn1_b"], m, ppad)

    # ---- pass 2: bn1 + relu fused into conv2 (3x3) + batch statistics ---------------
    acc2, st2 = pl.pallas_call(
        _make_conv2_kernel(h, w, ppad, buf_rows),
        grid=(n,),
        in_specs=[_img_spec(hw, ppad), _bcast_spec((2, ppad)), _bcast_spec(w2.shape)],
        out_specs=(_img_spec(hw, ppad), _bcast_spec((2, ppad))),
        out_shape=(jax.ShapeDtypeStruct((n, hw, ppad), jnp.bfloat16),
                   jax.ShapeDtypeStruct((2, ppad), jnp.float32)),
        scratch_shapes=[pltpu.VMEM((buf_rows, ppad), jnp.bfloat16)],
        compiler_params=cp_red,
        cost_estimate=pl.CostEstimate(
            flops=2 * 9 * m * ppad * ppad, transcendentals=0,
            bytes_accessed=2 * (2 * m * ppad + 9 * ppad * ppad)),
    )(acc1, ss1, w2)
    ss2 = _scale_shift(st2, params["bn2_g"], params["bn2_b"], m, ppad)

    # ---- pass 3: bn2 + relu fused into conv3 (1x1) + batch statistics ---------------
    acc3, st3 = pl.pallas_call(
        _conv3_kernel,
        grid=(n,),
        in_specs=[_img_spec(hw, ppad), _bcast_spec((2, ppad)), _bcast_spec(w3.shape)],
        out_specs=(_img_spec(hw, cout), _bcast_spec((2, cout))),
        out_shape=(jax.ShapeDtypeStruct((n, hw, cout), jnp.bfloat16),
                   jax.ShapeDtypeStruct((2, cout), jnp.float32)),
        compiler_params=cp_red,
        cost_estimate=pl.CostEstimate(
            flops=2 * m * ppad * cout, transcendentals=0,
            bytes_accessed=2 * (m * ppad + ppad * cout + m * cout)),
    )(acc2, ss2, w3)
    ss3 = _scale_shift(st3, params["bn3_g"], params["bn3_b"], m, cout)

    # ---- pass 4: bn3 + residual + relu (no reduction -> 'parallel' for v7x 2 TCs) ---
    out3d = pl.pallas_call(
        _finalize_kernel,
        grid=(n,),
        in_specs=[_img_spec(hw, cout), _bcast_spec((2, cout)), _img_spec(hw, cin)],
        out_specs=_img_spec(hw, cout),
        out_shape=jax.ShapeDtypeStruct((n, hw, cout), jnp.float32),
        compiler_params=cp_par,
        cost_estimate=pl.CostEstimate(
            flops=4 * m * cout, transcendentals=0,
            bytes_accessed=2 * m * cout + 2 * m * cin + 4 * m * cout),
    )(acc3, ss3, x3d)

    out = out3d.reshape(n, h, w, cout)
    return jnp.transpose(out, (0, 3, 1, 2)).astype(x_nchw.dtype)


# ----------------------------------------------------------------------------
# Deterministic parameter init (PyTorch-layout weights: OIHW, bias-free convs)
# ----------------------------------------------------------------------------
def init_params(key, inplanes, planes):
    cout = 4 * planes
    k1, k2, k3, k4, k5 = jax.random.split(key, 5)
    w1 = jax.random.normal(k1, (planes, inplanes, 1, 1), jnp.float32) * math.sqrt(2.0 / inplanes)
    w2 = jax.random.normal(k2, (planes, planes, 3, 3), jnp.float32) * math.sqrt(2.0 / (9 * planes))
    w3 = jax.random.normal(k3, (cout, planes, 1, 1), jnp.float32) * math.sqrt(2.0 / planes)
    gk = jax.random.split(k4, 3)
    bk = jax.random.split(k5, 3)
    return {
        "planes": planes,
        "conv1_w": w1, "conv2_w": w2, "conv3_w": w3,
        "bn1_g": 1.0 + 0.1 * jax.random.normal(gk[0], (planes,), jnp.float32),
        "bn2_g": 1.0 + 0.1 * jax.random.normal(gk[1], (planes,), jnp.float32),
        "bn3_g": 1.0 + 0.1 * jax.random.normal(gk[2], (cout,), jnp.float32),
        "bn1_b": 0.1 * jax.random.normal(bk[0], (planes,), jnp.float32),
        "bn2_b": 0.1 * jax.random.normal(bk[1], (planes,), jnp.float32),
        "bn3_b": 0.1 * jax.random.normal(bk[2], (cout,), jnp.float32),
    }


# ----------------------------------------------------------------------------
# Pure-JAX f32 reference of the PyTorch Bottleneck forward (for validation)
# ----------------------------------------------------------------------------
def bottleneck_reference(x, params):
    def bn(y, g, b):
        mean = jnp.mean(y, axis=(0, 2, 3), keepdims=True)
        var = jnp.mean(jnp.square(y - mean), axis=(0, 2, 3), keepdims=True)
        return ((y - mean) * jax.lax.rsqrt(var + _EPS) * g.reshape(1, -1, 1, 1)
                + b.reshape(1, -1, 1, 1))

    def conv(y, wgt, pad):
        return jax.lax.conv_general_dilated(
            y, wgt, window_strides=(1, 1), padding=[(pad, pad), (pad, pad)],
            dimension_numbers=("NCHW", "OIHW", "NCHW"))

    out = jax.nn.relu(bn(conv(x, params["conv1_w"], 0), params["bn1_g"], params["bn1_b"]))
    out = jax.nn.relu(bn(conv(out, params["conv2_w"], 1), params["bn2_g"], params["bn2_b"]))
    out = bn(conv(out, params["conv3_w"], 0), params["bn3_g"], params["bn3_b"]) + x
    return jax.nn.relu(out)


if __name__ == "__main__":
    key = jax.random.PRNGKey(0)
    kx, kp = jax.random.split(key)
    inplanes, planes = 64, 16        # downsample=None => inplanes == planes * expansion(4)
    x = jax.random.normal(kx, (2, inplanes, 16, 16), jnp.float32)
    params = init_params(kp, inplanes, planes)

    out = bottleneck_forward(x, params)
    jax.block_until_ready(out)
    assert out.shape == x.shape and out.dtype == jnp.float32

    ref = bottleneck_reference(x, params)
    err = float(jnp.max(jnp.abs(out - ref)))
    assert err < 0.35, f"mismatch vs reference: max abs err {err}"
    print("KERNEL_OK")
</pallas_src>

<mosaic_0001>
module attributes {stable_mosaic.version = 11 : i64} {
  func.func @_conv1_kernel(%arg0: i32, %arg1: memref<1x256x64xbf16, #tpu.memory_space<vmem>>, %arg2: memref<64x128xbf16, #tpu.memory_space<vmem>>, %arg3: memref<1x256x128xbf16, #tpu.memory_space<vmem>>, %arg4: memref<2x128xf32, #tpu.memory_space<vmem>>) attributes {dimension_semantics = [#tpu.dimension_semantics<arbitrary>], iteration_bounds = array<i64: 2>, scalar_prefetch = 0 : i64, scratch_operands = 0 : i64, tpu.core_type = #tpu.core_type<tc>, window_params = [{transform_indices = @transform_0, window_bounds = array<i64: 1, 256, 64>}, {pipeline_mode = #tpu.pipeline_mode<synchronous>, transform_indices = @transform_1, window_bounds = array<i64: 64, 128>}, {transform_indices = @transform_2, window_bounds = array<i64: 1, 256, 128>}, {pipeline_mode = #tpu.pipeline_mode<synchronous>, transform_indices = @transform_3, window_bounds = array<i64: 2, 128>}]} {
    %c0 = arith.constant 0 : index
    %c0_0 = arith.constant 0 : index
    %c0_1 = arith.constant 0 : index
    %0 = vector.load %arg1[%c0, %c0_0, %c0_1] : memref<1x256x64xbf16, #tpu.memory_space<vmem>>, vector<1x256x64xbf16>
    %1 = vector.shape_cast %0 : vector<1x256x64xbf16> to vector<256x64xbf16>
    %c0_2 = arith.constant 0 : index
    %c0_3 = arith.constant 0 : index
    %2 = vector.load %arg2[%c0_2, %c0_3] : memref<64x128xbf16, #tpu.memory_space<vmem>>, vector<64x128xbf16>
    %cst = arith.constant dense<0.000000e+00> : vector<256x128xf32>
    %3 = tpu.matmul %1, %2, %cst {dimension_numbers = #tpu.dot_dimension_numbers<[1], [0], [0], [1], [0, 0, 1, 1], [], []>} : vector<256x64xbf16>, vector<64x128xbf16>, vector<256x128xf32> -> vector<256x128xf32>
    %4 = arith.truncf %3 : vector<256x128xf32> to vector<256x128xbf16>
    %c0_4 = arith.constant 0 : index
    %c0_5 = arith.constant 0 : index
    %c0_6 = arith.constant 0 : index
    %5 = vector.load %arg3[%c0_4, %c0_5, %c0_6] : memref<1x256x128xbf16, #tpu.memory_space<vmem>>, vector<1x256x128xbf16>
    %6 = vector.shape_cast %5 : vector<1x256x128xbf16> to vector<256x128xbf16>
    %7 = vector.shape_cast %4 : vector<256x128xbf16> to vector<1x256x128xbf16>
    tpu.vector_store %arg3[%c0_4, %c0_5, %c0_6], %7 {strides = array<i32>} : memref<1x256x128xbf16, #tpu.memory_space<vmem>>, vector<1x256x128xbf16>,
    %c0_i32 = arith.constant 0 : i32
    %8 = arith.cmpi eq, %arg0, %c0_i32 : i32
    %9 = arith.extui %8 : i1 to i32
    %c0_i32_7 = arith.constant 0 : i32
    %10 = arith.cmpi ne, %9, %c0_i32_7 : i32
    scf.if %10 {
      %cst_14 = arith.constant 0.000000e+00 : f32
      %20 = vector.broadcast %cst_14 : f32 to vector<2x128xf32>
      %c0_15 = arith.constant 0 : index
      %c0_16 = arith.constant 0 : index
      %21 = vector.load %arg4[%c0_15, %c0_16] : memref<2x128xf32, #tpu.memory_space<vmem>>, vector<2x128xf32>
      tpu.vector_store %arg4[%c0_15, %c0_16], %20 {strides = array<i32>} : memref<2x128xf32, #tpu.memory_space<vmem>>, vector<2x128xf32>,
    } else {
    }
    %c0_8 = arith.constant 0 : index
    %c0_9 = arith.constant 0 : index
    %11 = vector.load %arg4[%c0_8, %c0_9] : memref<2x128xf32, #tpu.memory_space<vmem>>, vector<2x128xf32>
    %cst_10 = arith.constant dense<0.000000e+00> : vector<128xf32>
    %12 = vector.multi_reduction <add>, %3, %cst_10 [0] : vector<256x128xf32> to vector<128xf32>
    %13 = vector.shape_cast %12 : vector<128xf32> to vector<1x128xf32>
    %14 = arith.mulf %3, %3 : vector<256x128xf32>
    %cst_11 = arith.constant dense<0.000000e+00> : vector<128xf32>
    %15 = vector.multi_reduction <add>, %14, %cst_11 [0] : vector<256x128xf32> to vector<128xf32>
    %16 = vector.shape_cast %15 : vector<128xf32> to vector<1x128xf32>
    %17 = tpu.concatenate %13, %16 in 0 : vector<1x128xf32>, vector<1x128xf32> -> vector<2x128xf32>
    %18 = arith.addf %11, %17 : vector<2x128xf32>
    %c0_12 = arith.constant 0 : index
    %c0_13 = arith.constant 0 : index
    %19 = vector.load %arg4[%c0_12, %c0_13] : memref<2x128xf32, #tpu.memory_space<vmem>>, vector<2x128xf32>
    tpu.vector_store %arg4[%c0_12, %c0_13], %18 {strides = array<i32>} : memref<2x128xf32, #tpu.memory_space<vmem>>, vector<2x128xf32>,
    return
  }
  func.func @transform_0(%arg0: i32) -> (i32, i32, i32) {
    %c0_i32 = arith.constant 0 : i32
    %c0_i32_0 = arith.constant 0 : i32
    %c0_i32_1 = arith.constant 0 : i32
    return %arg0, %c0_i32, %c0_i32_0 : i32, i32, i32
  }
  func.func @transform_1(%arg0: i32) -> (i32, i32) {
    %c0_i32 = arith.constant 0 : i32
    %c0_i32_0 = arith.constant 0 : i32
    %c0_i32_1 = arith.constant 0 : i32
    return %c0_i32, %c0_i32_0 : i32, i32
  }
  func.func @transform_2(%arg0: i32) -> (i32, i32, i32) {
    %c0_i32 = arith.constant 0 : i32
    %c0_i32_0 = arith.constant 0 : i32
    %c0_i32_1 = arith.constant 0 : i32
    return %arg0, %c0_i32, %c0_i32_0 : i32, i32, i32
  }
  func.func @transform_3(%arg0: i32) -> (i32, i32) {
    %c0_i32 = arith.constant 0 : i32
    %c0_i32_0 = arith.constant 0 : i32
    %c0_i32_1 = arith.constant 0 : i32
    return %c0_i32, %c0_i32_0 : i32, i32
  }
}

</mosaic_0001>

<llo_original>
// kernel: tpu_custom_call.1
$region0: #{tpu_custom_call.1}
  #allocation0 [shape = 'u32[]', space=smem, size = 0x4, offset = 0x4, fixed_abs, tag = 'smem constant byte address 0x4 - core index']
  #allocation1 [shape = 'u32[144,128]{1,0:T(1,128)}', space=vmem, size = 0x12000, scoped, tag = 'internal scratch']
  %s0 = inlined_call_operand.hbm [shape: bf16[2,256,64], index: 0, kind: input, shape index: {}]
  %s1 = inlined_call_operand.hbm [shape: bf16[64,128], index: 1, kind: input, shape index: {}]
  %s2 = inlined_call_operand.hbm [shape: bf16[2,256,128], index: 2, kind: output, shape index: {0}]
  %s3 = inlined_call_operand.hbm [shape: f32[2,128], index: 3, kind: output, shape index: {1}]
  %4 = xla_tuple %s2, %s3
  %s5 = sld [smem:[#allocation0]]
  $region61: #{tpu_custom_call.1} parent=0
    _
  %s7 = ssub.s32 1, %s5
  %s8 = scalar_select 0, %s7, %s5
  $region1: #{tpu_custom_call.1} parent=0
    #allocation2 [shape = 'u8[131072]{0}', space=vmem, size = 0x20000, scoped, tag = 'input window, operand 0']
    #allocation3 [shape = 's32[2]{0}', space=sflag, size = 0x8, scoped, tag = 'scoped memory for tpu_custom_call.1']
    #allocation4 [shape = 's32[2]{0}', space=sflag, size = 0x8, scoped, tag = 'scoped memory for tpu_custom_call.1']
    #allocation5 [shape = 'u8[16384]{0}', space=vmem, size = 0x4000, scoped, tag = 'input window, operand 1, single buffered']
    #allocation6 [shape = 's32[1]{0}', space=sflag, size = 0x4, scoped, tag = 'scoped memory for tpu_custom_call.1']
    #allocation7 [shape = 'u8[131072]{0}', space=vmem, size = 0x20000, scoped, tag = 'output window, operand 0']
    #allocation8 [shape = 'u8[1024]{0}', space=vmem, size = 0x400, scoped, tag = 'output window, operand 1, single buffered']
    #allocation9 [shape = 's32[1]{0}', space=sflag, size = 0x4, scoped, tag = 'scoped memory for tpu_custom_call.1']
    %9 = vsyncpa [#allocation3], 0
    %s10 = scalar_lea.sflag [#allocation3], 1
    %11 = vsyncpa %s10, 0
    %12 = vsyncpa [#allocation6], 0
    %13 = vsyncpa [#allocation4], 0
    %s14 = scalar_lea.sflag [#allocation4], 1
    %15 = vsyncpa %s14, 0
    %16 = vsyncpa [#allocation9], 0
    loop: start=0, step=1, limit=4
    $region2: #{tpu_custom_call.1} parent=1 // loop_pre_header
      _
    $region3: #{tpu_custom_call.1} parent=1 // loop_header
      %s18 = sphi 0, %s22
      %p19 = scmp.ge.s32.totalorder %s18, 4
      %s28 = sphi 0, %s30
      %s31 = sphi 0, %s28
      %s32 = sphi 0, %s31
      %s48 = sphi 0, %s32
      %s52 = sphi 0, %s52
      %s54 = sphi 0, %s52
      %s55 = sphi 0, %s54
      %s69 = sphi 0, %s55
      %s75 = sphi 0, %s77
      %s78 = sphi 0, %s75
      %s79 = sphi 0, %s78
      %s95 = sphi 0, %s79
      %s99 = sphi 0, %s99
      %s101 = sphi 0, %s99
      %s102 = sphi 0, %s101
      %s116 = sphi 0, %s102
    $region4: #{tpu_custom_call.1} parent=1 // loop_header_branch
      %21 = sbr.rel (%p19) target = $region8
    $region5: #{tpu_custom_call.1} parent=1 // loop_body
      %s23 = ssub.s32 %s18, 1
      %s24 = ssub.s32 %s18, 2
      %s25 = sadd.s32 %s18, 1
      %s26 = ssub.s32 %s18, %s25
      %p27 = scmp.eq.s32.totalorder %s26, 0
      %s29 = sadd.s32 %s28, 1
      %s30 = scalar_select %p27, %s28, %s29
      %p33 = pneg %p27
      %p34 = scmp.eq.s32.totalorder %s18, 1
      %p35 = por %p33, %p34
      %p36 = scmp.ne.s32.totalorder %s28, %s31
      %p37 = scmp.eq.s32.totalorder %s18, 0
      %p38 = por %p36, %p37
      %p39 = scmp.ne.s32.totalorder %s28, %s31
      %p40 = scmp.eq.s32.totalorder %s23, 1
      %p41 = por %p39, %p40
      %p42 = scmp.ne.s32.totalorder %s31, %s32
      %p43 = scmp.eq.s32.totalorder %s23, 0
      %p44 = por %p42, %p43
      %p45 = scmp.ne.s32.totalorder %s31, %s32
      %p46 = scmp.eq.s32.totalorder %s24, 1
      %p47 = por %p45, %p46
      %p49 = scmp.ne.s32.totalorder %s32, %s48
      %p50 = scmp.eq.s32.totalorder %s24, 0
      %p51 = por %p49, %p50
      %s53 = sadd.s32 %s52, 1
      %p56 = scmp.eq.s32.totalorder %s18, 1
      %p57 = scmp.ne.s32.totalorder %s52, %s54
      %p58 = scmp.eq.s32.totalorder %s18, 0
      %p59 = por %p57, %p58
      %p60 = scmp.ne.s32.totalorder %s52, %s54
      %p61 = scmp.eq.s32.totalorder %s23, 1
      %p62 = por %p60, %p61
      %p63 = scmp.ne.s32.totalorder %s54, %s55
      %p64 = scmp.eq.s32.totalorder %s23, 0
      %p65 = por %p63, %p64
      %p66 = scmp.ne.s32.totalorder %s54, %s55
      %p67 = scmp.eq.s32.totalorder %s24, 1
      %p68 = por %p66, %p67
      %p70 = scmp.ne.s32.totalorder %s55, %s69
      %p71 = scmp.eq.s32.totalorder %s24, 0
      %p72 = por %p70, %p71
      %s73 = ssub.s32 %s18, %s25
      %p74 = scmp.eq.s32.totalorder %s73, 0
      %s76 = sadd.s32 %s75, 1
      %s77 = scalar_select %p74, %s75, %s76
      %p80 = pneg %p74
      %p81 = scmp.eq.s32.totalorder %s18, 1
      %p82 = por %p80, %p81
      %p83 = scmp.ne.s32.totalorder %s75, %s78
      %p84 = scmp.eq.s32.totalorder %s18, 0
      %p85 = por %p83, %p84
      %p86 = scmp.ne.s32.totalorder %s75, %s78
      %p87 = scmp.eq.s32.totalorder %s23, 1
      %p88 = por %p86, %p87
      %p89 = scmp.ne.s32.totalorder %s78, %s79
      %p90 = scmp.eq.s32.totalorder %s23, 0
      %p91 = por %p89, %p90
      %p92 = scmp.ne.s32.totalorder %s78, %s79
      %p93 = scmp.eq.s32.totalorder %s24, 1
      %p94 = por %p92, %p93
      %p96 = scmp.ne.s32.totalorder %s79, %s95
      %p97 = scmp.eq.s32.totalorder %s24, 0
      %p98 = por %p96, %p97
      %s100 = sadd.s32 %s99, 1
      %p103 = scmp.eq.s32.totalorder %s18, 1
      %p104 = scmp.ne.s32.totalorder %s99, %s101
      %p105 = scmp.eq.s32.totalorder %s18, 0
      %p106 = por %p104, %p105
      %p107 = scmp.ne.s32.totalorder %s99, %s101
      %p108 = scmp.eq.s32.totalorder %s23, 1
      %p109 = por %p107, %p108
      %p110 = scmp.ne.s32.totalorder %s101, %s102
      %p111 = scmp.eq.s32.totalorder %s23, 0
      %p112 = por %p110, %p111
      %p113 = scmp.ne.s32.totalorder %s101, %s102
      %p114 = scmp.eq.s32.totalorder %s24, 1
      %p115 = por %p113, %p114
      %p117 = scmp.ne.s32.totalorder %s102, %s116
      %p118 = scmp.eq.s32.totalorder %s24, 0
      %p119 = por %p117, %p118
      %p120 = scmp.le.s32.totalorder 1, %s18
      %p121 = scmp.lt.s32.totalorder %s18, 3
      %p122 = pnand %p120, %p121
      %p123 = pneg %p122
      // Predicated region
      $region9: #{tpu_custom_call.1} parent=5 // pred_check
        _
      $region10: #{tpu_custom_call.1} parent=5 // pred_check_branch
        %125 = sbr.rel (%p122) target = $region12
      $region11: #{tpu_custom_call.1} parent=5 // pred_region
        %s126 = ssub.s32 %s18, 1
        // Predicated region
        $region13: #{tpu_custom_call.1} parent=11 // pred_check
          %p127 = pneg %p65
        $region14: #{tpu_custom_call.1} parent=11 // pred_check_branch
          %129 = sbr.rel (%p127) target = $region16
        $region15: #{tpu_custom_call.1} parent=11 // pred_region
          %s131 = ssub.s32 512, 512
          %132 = vsyncadd [#allocation6], %s131
          %s133 = sshll.u32 [#allocation5], 4
          %s134 = int_to_ptr.vmem [resolvable:$true] %s133
          %139 = dma.hbm_to_vmem [thread:$0]  %s1, 512, %s134, [#allocation6], 64, 64, 4
        $region16: #{tpu_custom_call.1} parent=11 // pred_fallthru
          _
      $region12: #{tpu_custom_call.1} parent=5 // pred_fallthru
        _
      %p140 = scmp.lt.s32.totalorder %s18, 2
      // Predicated region
      $region17: #{tpu_custom_call.1} parent=5 // pred_check
        %p141 = pneg %p140
      $region18: #{tpu_custom_call.1} parent=5 // pred_check_branch
        %143 = sbr.rel (%p141) target = $region20
      $region19: #{tpu_custom_call.1} parent=5 // pred_region
        // Predicated region
        $region21: #{tpu_custom_call.1} parent=19 // pred_check
          %p144 = pneg %p38
        $region22: #{tpu_custom_call.1} parent=19 // pred_check_branch
          %146 = sbr.rel (%p144) target = $region24
        $region23: #{tpu_custom_call.1} parent=19 // pred_region
          %s147 = sand.u32 %s28, 1
          %s148 = scalar_lea.sflag [#allocation3], %s147
          %s149 = sand.u32 %s28, 1
          %s150 = smul.addr %s149, 128
          %s151 = scalar_lea.vmem [#allocation2], %s150
          %s153 = ssub.s32 2048, 2048
          %154 = vsyncadd %s148, %s153
          %s155 = smul.addr %s18, 32
          %s156 = smul.addr %s155, 64
          %s157 = scalar_lea.hbm %s0, %s156
          %s158 = sshll.u32 %s151, 4
          %s159 = int_to_ptr.vmem [resolvable:$true] %s158
          %164 = dma.hbm_to_vmem [thread:$0]  %s157, 2048, %s159, %s148, 64, 64, 4
        $region24: #{tpu_custom_call.1} parent=19 // pred_fallthru
          _
      $region20: #{tpu_custom_call.1} parent=5 // pred_fallthru
        _
      %p165 = scmp.le.s32.totalorder 1, %s18
      %p166 = scmp.lt.s32.totalorder %s18, 3
      %p167 = pnand %p165, %p166
      %p168 = pneg %p167
      // Predicated region
      $region25: #{tpu_custom_call.1} parent=5 // pred_check
        _
      $region26: #{tpu_custom_call.1} parent=5 // pred_check_branch
        %170 = sbr.rel (%p167) target = $region28
      $region27: #{tpu_custom_call.1} parent=5 // pred_region
        %s171 = ssub.s32 %s18, 1
        %s172 = sand.u32 %s31, 1
        %s173 = scalar_lea.sflag [#allocation3], %s172
        %s174 = sand.u32 %s31, 1
        %s175 = smul.addr %s174, 128
        %s176 = scalar_lea.vmem [#allocation2], %s175
        // Predicated region
        $region29: #{tpu_custom_call.1} parent=27 // pred_check
          %p177 = pneg %p44
        $region30: #{tpu_custom_call.1} parent=27 // pred_check_branch
          %179 = sbr.rel (%p177) target = $region32
        $region31: #{tpu_custom_call.1} parent=27 // pred_region
          %180 = dma.done %s173, 2048
        $region32: #{tpu_custom_call.1} parent=27 // pred_fallthru
          _
        // Predicated region
        $region33: #{tpu_custom_call.1} parent=27 // pred_check
          %p181 = pneg %p65
        $region34: #{tpu_custom_call.1} parent=27 // pred_check_branch
          %183 = sbr.rel (%p181) target = $region36
        $region35: #{tpu_custom_call.1} parent=27 // pred_region
          %184 = dma.done [#allocation6], 512
        $region36: #{tpu_custom_call.1} parent=27 // pred_fallthru
          _
        %s185 = sand.u32 %s31, 1
        %s186 = scalar_lea.sflag [#allocation3], %s185
        %s187 = sand.u32 %s31, 1
        %s188 = smul.addr %s187, 128
        %s189 = scalar_lea.vmem [#allocation2], %s188
        %p190 = pneg %p44
        %p191 = pneg %p41
        %p192 = pneg %p65
        %p193 = pneg %p62
        %p194 = pneg %p91
        %p195 = pneg %p88
        %s196 = sand.u32 %s78, 1
        %s197 = scalar_lea.sflag [#allocation4], %s196
        %s198 = sand.u32 %s78, 1
        %s199 = smul.addr %s198, 128
        %s200 = scalar_lea.vmem [#allocation7], %s199
        %p201 = pneg %p112
        %p202 = pneg %p109
        %v204 = vld [vmem:[%s176] sm:$0xf]
        %v205 = vld [vmem:[%s176 + $0x4] sm:$0xf]
        %v206 = vld [vmem:[%s176 + $0x8] sm:$0xf]
        %v207 = vld [vmem:[%s176 + $0xc] sm:$0xf]
        %v208 = vld [vmem:[%s176 + $0x10] sm:$0xf]
        %v209 = vld [vmem:[%s176 + $0x14] sm:$0xf]
        %v210 = vld [vmem:[%s176 + $0x18] sm:$0xf]
        %v211 = vld [vmem:[%s176 + $0x1c] sm:$0xf]
        %v212 = vld [vmem:[%s176 + $0x20] sm:$0xf]
        %v213 = vld [vmem:[%s176 + $0x24] sm:$0xf]
        %v214 = vld [vmem:[%s176 + $0x28] sm:$0xf]
        %v215 = vld [vmem:[%s176 + $0x2c] sm:$0xf]
        %v216 = vld [vmem:[%s176 + $0x30] sm:$0xf]
        %v217 = vld [vmem:[%s176 + $0x34] sm:$0xf]
        %v218 = vld [vmem:[%s176 + $0x38] sm:$0xf]
        %v219 = vld [vmem:[%s176 + $0x3c] sm:$0xf]
        %v220 = vld [vmem:[%s176 + $0x40] sm:$0xf]
        %v221 = vld [vmem:[%s176 + $0x44] sm:$0xf]
        %v222 = vld [vmem:[%s176 + $0x48] sm:$0xf]
        %v223 = vld [vmem:[%s176 + $0x4c] sm:$0xf]
        %v224 = vld [vmem:[%s176 + $0x50] sm:$0xf]
        %v225 = vld [vmem:[%s176 + $0x54] sm:$0xf]
        %v226 = vld [vmem:[%s176 + $0x58] sm:$0xf]
        %v227 = vld [vmem:[%s176 + $0x5c] sm:$0xf]
        %v228 = vld [vmem:[%s176 + $0x60] sm:$0xf]
        %v229 = vld [vmem:[%s176 + $0x64] sm:$0xf]
        %v230 = vld [vmem:[%s176 + $0x68] sm:$0xf]
        %v231 = vld [vmem:[%s176 + $0x6c] sm:$0xf]
        %v232 = vld [vmem:[%s176 + $0x70] sm:$0xf]
        %v233 = vld [vmem:[%s176 + $0x74] sm:$0xf]
        %v234 = vld [vmem:[%s176 + $0x78] sm:$0xf]
        %v235 = vld [vmem:[%s176 + $0x7c] sm:$0xf]
        %v236 = vld [vmem:[#allocation5] sm:$0xf]
        %v237 = vld [vmem:[#allocation5 + $0x4] sm:$0xf]
        %v238 = vld [vmem:[#allocation5 + $0x8] sm:$0xf]
        %v239 = vld [vmem:[#allocation5 + $0xc] sm:$0xf]
        %v240 = vld [vmem:[#allocation5 + $0x10] sm:$0xf]
        %v241 = vld [vmem:[#allocation5 + $0x14] sm:$0xf]
        %v242 = vld [vmem:[#allocation5 + $0x18] sm:$0xf]
        %v243 = vld [vmem:[#allocation5 + $0x1c] sm:$0xf]
        %v276 = vunpack.c.l.b16 %v204
        %v277 = vunpack.c.l.b16 %v205
        %v278 = vunpack.c.l.b16 %v206
        %v279 = vunpack.c.l.b16 %v207
        %v280 = vunpack.c.l.b16 %v208
        %v281 = vunpack.c.l.b16 %v209
        %v282 = vunpack.c.l.b16 %v210
        %v283 = vunpack.c.l.b16 %v211
        %v284 = vunpack.c.l.b16 %v212
        %v285 = vunpack.c.l.b16 %v213
        %v286 = vunpack.c.l.b16 %v214
        %v287 = vunpack.c.l.b16 %v215
        %v288 = vunpack.c.l.b16 %v216
        %v289 = vunpack.c.l.b16 %v217
        %v290 = vunpack.c.l.b16 %v218
        %v291 = vunpack.c.l.b16 %v219
        %v292 = vunpack.c.l.b16 %v220
        %v293 = vunpack.c.l.b16 %v221
        %v294 = vunpack.c.l.b16 %v222
        %v295 = vunpack.c.l.b16 %v223
        %v296 = vunpack.c.l.b16 %v224
        %v297 = vunpack.c.l.b16 %v225
        %v298 = vunpack.c.l.b16 %v226
        %v299 = vunpack.c.l.b16 %v227
        %v300 = vunpack.c.l.b16 %v228
        %v301 = vunpack.c.l.b16 %v229
        %v302 = vunpack.c.l.b16 %v230
        %v303 = vunpack.c.l.b16 %v231
        %v304 = vunpack.c.l.b16 %v232
        %v305 = vunpack.c.l.b16 %v233
        %v306 = vunpack.c.l.b16 %v234
        %v307 = vunpack.c.l.b16 %v235
        %v308 = vpack.c.b16 %v277, %v276
        %v309 = vpack.c.b16 %v279, %v278
        %v310 = vpack.c.b16 %v281, %v280
        %v311 = vpack.c.b16 %v283, %v282
        %v312 = vpack.c.b16 %v285, %v284
        %v313 = vpack.c.b16 %v287, %v286
        %v314 = vpack.c.b16 %v289, %v288
        %v315 = vpack.c.b16 %v291, %v290
        %v316 = vpack.c.b16 %v293, %v292
        %v317 = vpack.c.b16 %v295, %v294
        %v318 = vpack.c.b16 %v297, %v296
        %v319 = vpack.c.b16 %v299, %v298
        %v320 = vpack.c.b16 %v301, %v300
        %v321 = vpack.c.b16 %v303, %v302
        %v322 = vpack.c.b16 %v305, %v304
        %v323 = vpack.c.b16 %v307, %v306
        %v332 = vunpack.c.l.b16 %v236
        %v333 = vunpack.c.l.b16 %v237
        %v334 = vunpack.c.l.b16 %v238
        %v335 = vunpack.c.l.b16 %v239
        %v336 = vunpack.c.l.b16 %v240
        %v337 = vunpack.c.l.b16 %v241
        %v338 = vunpack.c.l.b16 %v242
        %v339 = vunpack.c.l.b16 %v243
        %v340 = vpack.c.b16 %v333, %v332
        %v341 = vpack.c.b16 %v335, %v334
        %v342 = vpack.c.b16 %v337, %v336
        %v343 = vpack.c.b16 %v339, %v338
        %vm348 = vcmask 523264
        %v350 = vsel %vm348, %v308, 0
        %v353 = vsel %vm348, %v309, 0
        %v356 = vsel %vm348, %v310, 0
        %v359 = vsel %vm348, %v311, 0
        %v362 = vsel %vm348, %v312, 0
        %v365 = vsel %vm348, %v313, 0
        %v368 = vsel %vm348, %v314, 0
        %v371 = vsel %vm348, %v315, 0
        %v374 = vsel %vm348, %v316, 0
        %v377 = vsel %vm348, %v317, 0
        %v380 = vsel %vm348, %v318, 0
        %v383 = vsel %vm348, %v319, 0
        %v386 = vsel %vm348, %v320, 0
        %v389 = vsel %vm348, %v321, 0
        %v392 = vsel %vm348, %v322, 0
        %v395 = vsel %vm348, %v323, 0
        %397 = vmatprep.subr.bf16.mxu0 0
        %398 = vmatpush1.bf16.msra.mxu0 %v340
        %399 = vmatprep.subr.bf16.mxu0 0
        %400 = vmatpush1.bf16.msra.mxu0 %v341
        %401 = vmatprep.subr.bf16.mxu0 0
        %402 = vmatpush1.bf16.msra.mxu0 %v342
        %403 = vmatprep.subr.bf16.mxu0 0
        %404 = vmatpush1.bf16.msra.mxu0 %v343
        %405 = vmatprep.subr.bf16.mxu0 0
        %406 = vmatpush1.bf16.msra.mxu0 0
        %407 = vmatprep.subr.bf16.mxu0 0
        %408 = vmatpush1.bf16.msra.mxu0 0
        %409 = vmatprep.subr.bf16.mxu0 0
        %410 = vmatpush1.bf16.msra.mxu0 0
        %411 = vmatprep.subr.bf16.mxu0 0
        %412 = vmatpush1.bf16.msra.mxu0 0
        %413 = vmatprep.subr.bf16.mxu0 0
        %414 = vmatpush1.bf16.msra.mxu0 0
        %415 = vmatprep.subr.bf16.mxu0 0
        %416 = vmatpush1.bf16.msra.mxu0 0
        %417 = vmatprep.subr.bf16.mxu0 0
        %418 = vmatpush1.bf16.msra.mxu0 0
        %419 = vmatprep.subr.bf16.mxu0 0
        %420 = vmatpush1.bf16.msra.mxu0 0
        %421 = vmatprep.subr.bf16.mxu0 0
        %422 = vmatpush1.bf16.msra.mxu0 0
        %423 = vmatprep.subr.bf16.mxu0 0
        %424 = vmatpush1.bf16.msra.mxu0 0
        %425 = vmatprep.subr.bf16.mxu0 0
        %426 = vmatpush1.bf16.msra.mxu0 0
        %427 = vmatprep.subr.bf16.mxu0 0
        %428 = vmatpush1.bf16.msra.mxu0 0
        %429 = vmatprep.mubr.bf16.mxu0 0
        %430 = vmatmul.mubr.bf16.gmra.mrb[0].mxu0 %v350
        %v431 = vpop.f32.mrb[0].mxu0
        %v432 = vadd.f32 0.0, %v431
        %v433 = vpop.f32.mrb[0].mxu0
        %v434 = vpop.f32.mrb[0].mxu0
        %v435 = vadd.f32 0.0, %v434
        %v436 = vpop.f32.mrb[0].mxu0
        %437 = vmatprep.mubr.bf16.mxu0 0
        %438 = vmatmul.mubr.bf16.gmra.mrb[0].mxu0 %v353
        %v439 = vpop.f32.mrb[0].mxu0
        %v440 = vadd.f32 0.0, %v439
        %v441 = vpop.f32.mrb[0].mxu0
        %v442 = vpop.f32.mrb[0].mxu0
        %v443 = vadd.f32 0.0, %v442
        %v444 = vpop.f32.mrb[0].mxu0
        %445 = vmatprep.mubr.bf16.mxu0 0
        %446 = vmatmul.mubr.bf16.gmra.mrb[0].mxu0 %v356
        %v447 = vpop.f32.mrb[0].mxu0
        %v448 = vadd.f32 0.0, %v447
        %v449 = vpop.f32.mrb[0].mxu0
        %v450 = vpop.f32.mrb[0].mxu0
        %v451 = vadd.f32 0.0, %v450
        %v452 = vpop.f32.mrb[0].mxu0
        %453 = vmatprep.mubr.bf16.mxu0 0
        %454 = vmatmul.mubr.bf16.gmra.mrb[0].mxu0 %v359
        %v455 = vpop.f32.mrb[0].mxu0
        %v456 = vadd.f32 0.0, %v455
        %v457 = vpop.f32.mrb[0].mxu0
        %v458 = vpop.f32.mrb[0].mxu0
        %v459 = vadd.f32 0.0, %v458
        %v460 = vpop.f32.mrb[0].mxu0
        %461 = vmatprep.mubr.bf16.mxu0 0
        %462 = vmatmul.mubr.bf16.gmra.mrb[0].mxu0 %v362
        %v463 = vpop.f32.mrb[0].mxu0
        %v464 = vadd.f32 0.0, %v463
        %v465 = vpop.f32.mrb[0].mxu0
        %v466 = vpop.f32.mrb[0].mxu0
        %v467 = vadd.f32 0.0, %v466
        %v468 = vpop.f32.mrb[0].mxu0
        %469 = vmatprep.mubr.bf16.mxu0 0
        %470 = vmatmul.mubr.bf16.gmra.mrb[0].mxu0 %v365
        %v471 = vpop.f32.mrb[0].mxu0
        %v472 = vadd.f32 0.0, %v471
        %v473 = vpop.f32.mrb[0].mxu0
        %v474 = vpop.f32.mrb[0].mxu0
        %v475 = vadd.f32 0.0, %v474
        %v476 = vpop.f32.mrb[0].mxu0
        %477 = vmatprep.mubr.bf16.mxu0 0
        %478 = vmatmul.mubr.bf16.gmra.mrb[0].mxu0 %v368
        %v479 = vpop.f32.mrb[0].mxu0
        %v480 = vadd.f32 0.0, %v479
        %v481 = vpop.f32.mrb[0].mxu0
        %v482 = vpop.f32.mrb[0].mxu0
        %v483 = vadd.f32 0.0, %v482
        %v484 = vpop.f32.mrb[0].mxu0
        %485 = vmatprep.mubr.bf16.mxu0 0
        %486 = vmatmul.mubr.bf16.gmra.mrb[0].mxu0 %v371
        %v487 = vpop.f32.mrb[0].mxu0
        %v488 = vadd.f32 0.0, %v487
        %v489 = vpop.f32.mrb[0].mxu0
        %v490 = vpop.f32.mrb[0].mxu0
        %v491 = vadd.f32 0.0, %v490
        %v492 = vpop.f32.mrb[0].mxu0
        %493 = vmatprep.mubr.bf16.mxu0 0
        %494 = vmatmul.mubr.bf16.gmra.mrb[0].mxu0 %v374
        %v495 = vpop.f32.mrb[0].mxu0
        %v496 = vadd.f32 0.0, %v495
        %v497 = vpop.f32.mrb[0].mxu0
        %v498 = vpop.f32.mrb[0].mxu0
        %v499 = vadd.f32 0.0, %v498
        %v500 = vpop.f32.mrb[0].mxu0
        %501 = vmatprep.mubr.bf16.mxu0 0
        %502 = vmatmul.mubr.bf16.gmra.mrb[0].mxu0 %v377
        %v503 = vpop.f32.mrb[0].mxu0
        %v504 = vadd.f32 0.0, %v503
        %v505 = vpop.f32.mrb[0].mxu0
        %v506 = vpop.f32.mrb[0].mxu0
        %v507 = vadd.f32 0.0, %v506
        %v508 = vpop.f32.mrb[0].mxu0
        %509 = vmatprep.mubr.bf16.mxu0 0
        %510 = vmatmul.mubr.bf16.gmra.mrb[0].mxu0 %v380
        %v511 = vpop.f32.mrb[0].mxu0
        %v512 = vadd.f32 0.0, %v511
        %v513 = vpop.f32.mrb[0].mxu0
        %v514 = vpop.f32.mrb[0].mxu0
        %v515 = vadd.f32 0.0, %v514
        %v516 = vpop.f32.mrb[0].mxu0
        %517 = vmatprep.mubr.bf16.mxu0 0
        %518 = vmatmul.mubr.bf16.gmra.mrb[0].mxu0 %v383
        %v519 = vpop.f32.mrb[0].mxu0
        %v520 = vadd.f32 0.0, %v519
        %v521 = vpop.f32.mrb[0].mxu0
        %v522 = vpop.f32.mrb[0].mxu0
        %v523 = vadd.f32 0.0, %v522
        %v524 = vpop.f32.mrb[0].mxu0
        %525 = vmatprep.mubr.bf16.mxu0 0
        %526 = vmatmul.mubr.bf16.gmra.mrb[0].mxu0 %v386
        %v527 = vpop.f32.mrb[0].mxu0
        %v528 = vadd.f32 0.0, %v527
        %v529 = vpop.f32.mrb[0].mxu0
        %v530 = vpop.f32.mrb[0].mxu0
        %v531 = vadd.f32 0.0, %v530
        %v532 = vpop.f32.mrb[0].mxu0
        %533 = vmatprep.mubr.bf16.mxu0 0
        %534 = vmatmul.mubr.bf16.gmra.mrb[0].mxu0 %v389
        %v535 = vpop.f32.mrb[0].mxu0
        %v536 = vadd.f32 0.0, %v535
        %v537 = vpop.f32.mrb[0].mxu0
        %v538 = vpop.f32.mrb[0].mxu0
        %v539 = vadd.f32 0.0, %v538
        %v540 = vpop.f32.mrb[0].mxu0
        %541 = vmatprep.mubr.bf16.mxu0 0
        %542 = vmatmul.mubr.bf16.gmra.mrb[0].mxu0 %v392
        %v543 = vpop.f32.mrb[0].mxu0
        %v544 = vadd.f32 0.0, %v543
        %v545 = vpop.f32.mrb[0].mxu0
        %v546 = vpop.f32.mrb[0].mxu0
        %v547 = vadd.f32 0.0, %v546
        %v548 = vpop.f32.mrb[0].mxu0
        %549 = vmatprep.mubr.bf16.mxu0 0
        %550 = vmatmul.mubr.bf16.gmra.mrb[0].mxu0 %v395
        %v551 = vpop.f32.mrb[0].mxu0
        %v552 = vadd.f32 0.0, %v551
        %v553 = vpop.f32.mrb[0].mxu0
        %v554 = vpop.f32.mrb[0].mxu0
        %v555 = vadd.f32 0.0, %v554
        %v556 = vpop.f32.mrb[0].mxu0
        %557 = vdwg.mxu0
        %v558 = vpack.c.bf16 %v435, %v432
        %v559 = vpack.c.bf16 %v443, %v440
        %v560 = vpack.c.bf16 %v451, %v448
        %v561 = vpack.c.bf16 %v459, %v456
        %v562 = vpack.c.bf16 %v467, %v464
        %v563 = vpack.c.bf16 %v475, %v472
        %v564 = vpack.c.bf16 %v483, %v480
        %v565 = vpack.c.bf16 %v491, %v488
        %v566 = vpack.c.bf16 %v499, %v496
        %v567 = vpack.c.bf16 %v507, %v504
        %v568 = vpack.c.bf16 %v515, %v512
        %v569 = vpack.c.bf16 %v523, %v520
        %v570 = vpack.c.bf16 %v531, %v528
        %v571 = vpack.c.bf16 %v539, %v536
        %v572 = vpack.c.bf16 %v547, %v544
        %v573 = vpack.c.bf16 %v555, %v552
        %v590 = vunpack.c.l.b16 %v558
        %v591 = vunpack.c.h.b16 %v558
        %v592 = vunpack.c.l.b16 %v559
        %v593 = vunpack.c.h.b16 %v559
        %v594 = vunpack.c.l.b16 %v560
        %v595 = vunpack.c.h.b16 %v560
        %v596 = vunpack.c.l.b16 %v561
        %v597 = vunpack.c.h.b16 %v561
        %v598 = vunpack.c.l.b16 %v562
        %v599 = vunpack.c.h.b16 %v562
        %v600 = vunpack.c.l.b16 %v563
        %v601 = vunpack.c.h.b16 %v563
        %v602 = vunpack.c.l.b16 %v564
        %v603 = vunpack.c.h.b16 %v564
        %v604 = vunpack.c.l.b16 %v565
        %v605 = vunpack.c.h.b16 %v565
        %v606 = vunpack.c.l.b16 %v566
        %v607 = vunpack.c.h.b16 %v566
        %v608 = vunpack.c.l.b16 %v567
        %v609 = vunpack.c.h.b16 %v567
        %v610 = vunpack.c.l.b16 %v568
        %v611 = vunpack.c.h.b16 %v568
        %v612 = vunpack.c.l.b16 %v569
        %v613 = vunpack.c.h.b16 %v569
        %v614 = vunpack.c.l.b16 %v570
        %v615 = vunpack.c.h.b16 %v570
        %v616 = vunpack.c.l.b16 %v571
        %v617 = vunpack.c.h.b16 %v571
        %v618 = vunpack.c.l.b16 %v572
        %v619 = vunpack.c.h.b16 %v572
        %v620 = vunpack.c.l.b16 %v573
        %v621 = vunpack.c.h.b16 %v573
        %v622 = vpack.c.b16 %v590, %v590
        %v623 = vpack.c.b16 %v591, %v591
        %v624 = vpack.c.b16 %v592, %v592
        %v625 = vpack.c.b16 %v593, %v593
        %v626 = vpack.c.b16 %v594, %v594
        %v627 = vpack.c.b16 %v595, %v595
        %v628 = vpack.c.b16 %v596, %v596
        %v629 = vpack.c.b16 %v597, %v597
        %v630 = vpack.c.b16 %v598, %v598
        %v631 = vpack.c.b16 %v599, %v599
        %v632 = vpack.c.b16 %v600, %v600
        %v633 = vpack.c.b16 %v601, %v601
        %v634 = vpack.c.b16 %v602, %v602
        %v635 = vpack.c.b16 %v603, %v603
        %v636 = vpack.c.b16 %v604, %v604
        %v637 = vpack.c.b16 %v605, %v605
        %v638 = vpack.c.b16 %v606, %v606
        %v639 = vpack.c.b16 %v607, %v607
        %v640 = vpack.c.b16 %v608, %v608
        %v641 = vpack.c.b16 %v609, %v609
        %v642 = vpack.c.b16 %v610, %v610
        %v643 = vpack.c.b16 %v611, %v611
        %v644 = vpack.c.b16 %v612, %v612
        %v645 = vpack.c.b16 %v613, %v613
        %v646 = vpack.c.b16 %v614, %v614
        %v647 = vpack.c.b16 %v615, %v615
        %v648 = vpack.c.b16 %v616, %v616
        %v649 = vpack.c.b16 %v617, %v617
        %v650 = vpack.c.b16 %v618, %v618
        %v651 = vpack.c.b16 %v619, %v619
        %v652 = vpack.c.b16 %v620, %v620
        %v653 = vpack.c.b16 %v621, %v621
        %686 = vst [vmem:[%s200] sm:$0xf] %v622
        %687 = vst [vmem:[%s200 + $0x4] sm:$0xf] %v623
        %688 = vst [vmem:[%s200 + $0x8] sm:$0xf] %v624
        %689 = vst [vmem:[%s200 + $0xc] sm:$0xf] %v625
        %690 = vst [vmem:[%s200 + $0x10] sm:$0xf] %v626
        %691 = vst [vmem:[%s200 + $0x14] sm:$0xf] %v627
        %692 = vst [vmem:[%s200 + $0x18] sm:$0xf] %v628
        %693 = vst [vmem:[%s200 + $0x1c] sm:$0xf] %v629
        %694 = vst [vmem:[%s200 + $0x20] sm:$0xf] %v630
        %695 = vst [vmem:[%s200 + $0x24] sm:$0xf] %v631
        %696 = vst [vmem:[%s200 + $0x28] sm:$0xf] %v632
        %697 = vst [vmem:[%s200 + $0x2c] sm:$0xf] %v633
        %698 = vst [vmem:[%s200 + $0x30] sm:$0xf] %v634
        %699 = vst [vmem:[%s200 + $0x34] sm:$0xf] %v635
        %700 = vst [vmem:[%s200 + $0x38] sm:$0xf] %v636
        %701 = vst [vmem:[%s200 + $0x3c] sm:$0xf] %v637
        %702 = vst [vmem:[%s200 + $0x40] sm:$0xf] %v638
        %703 = vst [vmem:[%s200 + $0x44] sm:$0xf] %v639
        %704 = vst [vmem:[%s200 + $0x48] sm:$0xf] %v640
        %705 = vst [vmem:[%s200 + $0x4c] sm:$0xf] %v641
        %706 = vst [vmem:[%s200 + $0x50] sm:$0xf] %v642
        %707 = vst [vmem:[%s200 + $0x54] sm:$0xf] %v643
        %708 = vst [vmem:[%s200 + $0x58] sm:$0xf] %v644
        %709 = vst [vmem:[%s200 + $0x5c] sm:$0xf] %v645
        %710 = vst [vmem:[%s200 + $0x60] sm:$0xf] %v646
        %711 = vst [vmem:[%s200 + $0x64] sm:$0xf] %v647
        %712 = vst [vmem:[%s200 + $0x68] sm:$0xf] %v648
        %713 = vst [vmem:[%s200 + $0x6c] sm:$0xf] %v649
        %714 = vst [vmem:[%s200 + $0x70] sm:$0xf] %v650
        %715 = vst [vmem:[%s200 + $0x74] sm:$0xf] %v651
        %716 = vst [vmem:[%s200 + $0x78] sm:$0xf] %v652
        %717 = vst [vmem:[%s200 + $0x7c] sm:$0xf] %v653
        %p718 = scmp.eq.s32.totalorder %s23, 0
        // Predicated region
        $region37: #{tpu_custom_call.1} parent=27 // pred_check
          %p719 = pneg %p718
        $region38: #{tpu_custom_call.1} parent=27 // pred_check_branch
          %721 = sbr.rel (%p719) target = $region40
        $region39: #{tpu_custom_call.1} parent=27 // pred_region
          %722 = vst [vmem:[#allocation8] sm:$0x3] 0.0
        $region40: #{tpu_custom_call.1} parent=27 // pred_fallthru
          _
        %v723 = vld [vmem:[#allocation8] sm:$0x3]
        %v724 = vadd.f32 %v432, %v435
        %v725 = vadd.f32 %v724, %v440
        %v726 = vadd.f32 %v725, %v443
        %v727 = vadd.f32 %v726, %v448
        %v728 = vadd.f32 %v727, %v451
        %v729 = vadd.f32 %v728, %v456
        %v730 = vadd.f32 %v729, %v459
        %v731 = vadd.f32 %v730, %v464
        %v732 = vadd.f32 %v731, %v467
        %v733 = vadd.f32 %v732, %v472
        %v734 = vadd.f32 %v733, %v475
        %v735 = vadd.f32 %v734, %v480
        %v736 = vadd.f32 %v735, %v483
        %v737 = vadd.f32 %v736, %v488
        %v738 = vadd.f32 %v737, %v491
        %v739 = vadd.f32 %v738, %v496
        %v740 = vadd.f32 %v739, %v499
        %v741 = vadd.f32 %v740, %v504
        %v742 = vadd.f32 %v741, %v507
        %v743 = vadd.f32 %v742, %v512
        %v744 = vadd.f32 %v743, %v515
        %v745 = vadd.f32 %v744, %v520
        %v746 = vadd.f32 %v745, %v523
        %v747 = vadd.f32 %v746, %v528
        %v748 = vadd.f32 %v747, %v531
        %v749 = vadd.f32 %v748, %v536
        %v750 = vadd.f32 %v749, %v539
        %v751 = vadd.f32 %v750, %v544
        %v752 = vadd.f32 %v751, %v547
        %v753 = vadd.f32 %v752, %v552
        %v754 = vadd.f32 %v753, %v555
        %v755 = vrot.slane %v754, 4
        %v756 = vadd.f32 %v754, %v755
        %v757 = vrot.slane %v756, 2
        %v758 = vadd.f32 %v756, %v757
        %v759 = vrot.slane %v758, 1
        %v760 = vadd.f32 %v758, %v759
        %v761 = vmul.f32 %v432, %v432
        %v762 = vmul.f32 %v435, %v435
        %v763 = vmul.f32 %v440, %v440
        %v764 = vmul.f32 %v443, %v443
        %v765 = vmul.f32 %v448, %v448
        %v766 = vmul.f32 %v451, %v451
        %v767 = vmul.f32 %v456, %v456
        %v768 = vmul.f32 %v459, %v459
        %v769 = vmul.f32 %v464, %v464
        %v770 = vmul.f32 %v467, %v467
        %v771 = vmul.f32 %v472, %v472
        %v772 = vmul.f32 %v475, %v475
        %v773 = vmul.f32 %v480, %v480
        %v774 = vmul.f32 %v483, %v483
        %v775 = vmul.f32 %v488, %v488
        %v776 = vmul.f32 %v491, %v491
        %v777 = vmul.f32 %v496, %v496
        %v778 = vmul.f32 %v499, %v499
        %v779 = vmul.f32 %v504, %v504
        %v780 = vmul.f32 %v507, %v507
        %v781 = vmul.f32 %v512, %v512
        %v782 = vmul.f32 %v515, %v515
        %v783 = vmul.f32 %v520, %v520
        %v784 = vmul.f32 %v523, %v523
        %v785 = vmul.f32 %v528, %v528
        %v786 = vmul.f32 %v531, %v531
        %v787 = vmul.f32 %v536, %v536
        %v788 = vmul.f32 %v539, %v539
        %v789 = vmul.f32 %v544, %v544
        %v790 = vmul.f32 %v547, %v547
        %v791 = vmul.f32 %v552, %v552
        %v792 = vmul.f32 %v555, %v555
        %v793 = vadd.f32 %v761, %v762
        %v794 = vadd.f32 %v793, %v763
        %v795 = vadd.f32 %v794, %v764
        %v796 = vadd.f32 %v795, %v765
        %v797 = vadd.f32 %v796, %v766
        %v798 = vadd.f32 %v797, %v767
        %v799 = vadd.f32 %v798, %v768
        %v800 = vadd.f32 %v799, %v769
        %v801 = vadd.f32 %v800, %v770
        %v802 = vadd.f32 %v801, %v771
        %v803 = vadd.f32 %v802, %v772
        %v804 = vadd.f32 %v803, %v773
        %v805 = vadd.f32 %v804, %v774
        %v806 = vadd.f32 %v805, %v775
        %v807 = vadd.f32 %v806, %v776
        %v808 = vadd.f32 %v807, %v777
        %v809 = vadd.f32 %v808, %v778
        %v810 = vadd.f32 %v809, %v779
        %v811 = vadd.f32 %v810, %v780
        %v812 = vadd.f32 %v811, %v781
        %v813 = vadd.f32 %v812, %v782
        %v814 = vadd.f32 %v813, %v783
        %v815 = vadd.f32 %v814, %v784
        %v816 = vadd.f32 %v815, %v785
        %v817 = vadd.f32 %v816, %v786
        %v818 = vadd.f32 %v817, %v787
        %v819 = vadd.f32 %v818, %v788
        %v820 = vadd.f32 %v819, %v789
        %v821 = vadd.f32 %v820, %v790
        %v822 = vadd.f32 %v821, %v791
        %v823 = vadd.f32 %v822, %v792
        %v824 = vrot.slane %v823, 4
        %v825 = vadd.f32 %v823, %v824
        %v826 = vrot.slane %v825, 2
        %v827 = vadd.f32 %v825, %v826
        %v828 = vrot.slane %v827, 1
        %v829 = vadd.f32 %v827, %v828
        %vm830 = vcmask 1040384
        %v831 = vsel %vm830, %v760, %v829
        %v832 = vadd.f32 %v723, %v831
        %833 = vst [vmem:[#allocation8] sm:$0x3] %v832
        %s834 = sand.u32 %s78, 1
        %s835 = scalar_lea.sflag [#allocation4], %s834
        %s836 = sand.u32 %s78, 1
        %s837 = smul.addr %s836, 128
        %s838 = scalar_lea.vmem [#allocation7], %s837
        // Predicated region
        $region41: #{tpu_custom_call.1} parent=27 // pred_check
          %p839 = pneg %p88
        $region42: #{tpu_custom_call.1} parent=27 // pred_check_branch
          %841 = sbr.rel (%p839) target = $region44
        $region43: #{tpu_custom_call.1} parent=27 // pred_region
          %s843 = ssub.s32 2048, 2048
          %844 = vsyncadd %s835, %s843
          %s845 = smul.addr %s23, 32
          %s846 = smul.addr %s845, 64
          %s847 = scalar_lea.hbm %s2, %s846
          %s848 = sshll.u32 %s838, 4
          %s849 = int_to_ptr.vmem [resolvable:$true] %s848
          %854 = dma.vmem_to_hbm [thread:$0]  %s849, 2048, %s847, %s835, 64, 64, 4
        $region44: #{tpu_custom_call.1} parent=27 // pred_fallthru
          _
        // Predicated region
        $region45: #{tpu_custom_call.1} parent=27 // pred_check
          %p855 = pneg %p109
        $region46: #{tpu_custom_call.1} parent=27 // pred_check_branch
          %857 = sbr.rel (%p855) target = $region48
        $region47: #{tpu_custom_call.1} parent=27 // pred_region
          %s859 = ssub.s32 32, 32
          %860 = vsyncadd [#allocation9], %s859
          %s862 = sshll.u32 [#allocation8], 4
          %s863 = int_to_ptr.vmem [resolvable:$true] %s862
          %865 = dma.vmem_to_hbm [thread:$0]  %s863, 32, %s3, [#allocation9]
        $region48: #{tpu_custom_call.1} parent=27 // pred_fallthru
          _
        // Predicated region
        $region49: #{tpu_custom_call.1} parent=27 // pred_check
          %p866 = pneg %p109
        $region50: #{tpu_custom_call.1} parent=27 // pred_check_branch
          %868 = sbr.rel (%p866) target = $region52
        $region51: #{tpu_custom_call.1} parent=27 // pred_region
          %869 = dma.done [#allocation9], 32
        $region52: #{tpu_custom_call.1} parent=27 // pred_fallthru
          _
      $region28: #{tpu_custom_call.1} parent=5 // pred_fallthru
        _
      %p870 = scmp.le.s32.totalorder 2, %s18
      // Predicated region
      $region53: #{tpu_custom_call.1} parent=5 // pred_check
        %p871 = pneg %p870
      $region54: #{tpu_custom_call.1} parent=5 // pred_check_branch
        %873 = sbr.rel (%p871) target = $region56
      $region55: #{tpu_custom_call.1} parent=5 // pred_region
        %s874 = ssub.s32 %s18, 2
        // Predicated region
        $region57: #{tpu_custom_call.1} parent=55 // pred_check
          %p875 = pneg %p94
        $region58: #{tpu_custom_call.1} parent=55 // pred_check_branch
          %877 = sbr.rel (%p875) target = $region60
        $region59: #{tpu_custom_call.1} parent=55 // pred_region
          %s878 = sand.u32 %s79, 1
          %s879 = scalar_lea.sflag [#allocation4], %s878
          %s880 = sand.u32 %s79, 1
          %s881 = smul.addr %s880, 128
          %s882 = scalar_lea.vmem [#allocation7], %s881
          %883 = dma.done %s879, 2048
        $region60: #{tpu_custom_call.1} parent=55 // pred_fallthru
          _
      $region56: #{tpu_custom_call.1} parent=5 // pred_fallthru
        _
    $region6: #{tpu_custom_call.1} parent=1 // loop_footer
      %s22 = sadd.s32 1, %s18
    $region7: #{tpu_custom_call.1} parent=1 // loop_footer_branch
      %17 = sbr.rel target = $region3
    $region8: #{tpu_custom_call.1} parent=1 // loop_exit
      _
    %884 = vsyncpa [#allocation3], 1
    %s885 = scalar_lea.sflag [#allocation3], 1
    %886 = vsyncpa %s885, 1
    %887 = vsyncpa [#allocation6], 1
    %888 = vsyncpa [#allocation4], 1
    %s889 = scalar_lea.sflag [#allocation4], 1
    %890 = vsyncpa %s889, 1
    %891 = vsyncpa [#allocation9], 1

</llo_original>
